<compile_context>
chip_gen: v7x
topology: tpu7x:2x2x1
jax: 0.10.0
libtpu: 0.0.40
codegen_flags: <defaults>
</compile_context>

<pallas_src>
import jax
import jax.numpy as jnp
from jax.experimental import pallas as pl
from jax.experimental.pallas import tpu as pltpu


def _round_up(x, m):
    return ((x + m - 1) // m) * m


def _make_vanet_kernel(action_dim, lane_dense_out):
    """Build the kernel with static action_dim / output-layout choice."""

    def vanet_kernel(x_ref, w1_ref, wav_ref, bav_ref, q_ref):
        """One batch-block of the dueling head.

        x_ref   : (bm, state_dim+1)   last column is constant 1 (carries b1)
        w1_ref  : (state_dim+1, H)    last row is b1
        wav_ref : (H, OUT)            cols = [A head | V head | zero pad]
        bav_ref : (1, OUT)            [ba | bv | 0...]
        q_ref   : (bm, OUT) lane-dense, or (bm, action_dim) packed
        """
        # fc1 + ReLU: one MXU pass, K=5 (pads to 8 sublanes), N=128 = 1 lane tile.
        h = jnp.dot(x_ref[...], w1_ref[...], preferred_element_type=jnp.float32)
        h = jnp.maximum(h, 0.0)

        # Fused [A | V] head (single MXU pass, 128x128) + bias broadcast (VPU).
        av = jnp.dot(h, wav_ref[...], preferred_element_type=jnp.float32)
        av = av + bav_ref[...]

        A = av[:, :action_dim]                      # (bm, action_dim)
        V = av[:, action_dim:action_dim + 1]        # (bm, 1)
        # Mean over the logical action_dim only (padded columns never enter).
        a_mean = jnp.mean(A, axis=1, keepdims=True)

        if lane_dense_out:
            # Full-width unmasked store.  Columns [0, action_dim) hold
            # Q = A + (V - mean); the remaining columns hold garbage and are
            # sliced off in the wrapper (never read).
            q_ref[...] = (av + (V - a_mean)).astype(q_ref.dtype)
        else:
            # Packed (bm, action_dim) store (v5e huge-batch fallback).
            q_ref[...] = (V + A - a_mean).astype(q_ref.dtype)

    return vanet_kernel


def vanet_forward(x, params, *, block_b=512, lane_dense_out=True):
    """x: (B, state_dim) float32. params: packed dict from pack_params().

    lane_dense_out: keep True (unmasked 128-lane stores) except for very large
    batches on v5e, where the 64x padded HBM write bytes eventually dominate.
    """
    B, S = x.shape
    w1 = params["w1_aug"]          # (S+1, H)   last row = b1
    wav = params["wav_pad"]        # (H, OUT)   [A | V | zeros], OUT = 128
    bav = params["bav_pad"]        # (1, OUT)
    a_dim = int(params["action_dim"])
    S1, H = w1.shape
    OUT = wav.shape[1]
    assert S1 == S + 1

    # Batch-block size: multiple of 8 sublanes; guarantee >= 2 grid blocks for
    # B >= 512 so v7x's two TensorCores both get work ("parallel" axis).
    if B >= 512:
        bm = min(block_b, _round_up(pl.cdiv(B, 2), 8))
    else:
        bm = min(block_b, _round_up(B, 8))
    n_blocks = pl.cdiv(B, bm)
    B_pad = n_blocks * bm

    # Append the constant-1 column (folds b1 into the fc1 matmul) and pad batch.
    x_aug = jnp.concatenate([x, jnp.ones((B, 1), x.dtype)], axis=1)
    if B_pad != B:
        x_aug = jnp.pad(x_aug, ((0, B_pad - B), (0, 0)))

    out_w = OUT if lane_dense_out else a_dim
    kernel = _make_vanet_kernel(a_dim, lane_dense_out)

    flops = 2 * B_pad * (S1 * H + H * OUT)
    bytes_accessed = 4 * (B_pad * S1 + S1 * H + H * OUT + OUT + B_pad * out_w)

    q = pl.pallas_call(
        kernel,
        out_shape=jax.ShapeDtypeStruct((B_pad, out_w), jnp.float32),
        grid=(n_blocks,),
        in_specs=[
            pl.BlockSpec((bm, S1), lambda i: (i, 0)),    # x streams over batch
            pl.BlockSpec((S1, H), lambda i: (0, 0)),     # weights stay resident
            pl.BlockSpec((H, OUT), lambda i: (0, 0)),
            pl.BlockSpec((1, OUT), lambda i: (0, 0)),
        ],
        out_specs=pl.BlockSpec((bm, out_w), lambda i: (i, 0)),
        compiler_params=pltpu.CompilerParams(
            dimension_semantics=("parallel",)),
        cost_estimate=pl.CostEstimate(
            flops=flops, transcendentals=0, bytes_accessed=bytes_accessed),
    )(x_aug, w1, wav, bav)

    # Drop batch padding and (in the lane-dense case) the padded Q columns.
    return q[:B, :a_dim]


def init_params(key, state_dim, hidden_dim, action_dim):
    """PyTorch-style Linear init: U(-1/sqrt(fan_in), 1/sqrt(fan_in)).
    Weights stored transposed as (in, out); biases as (1, out)."""
    ks = jax.random.split(key, 6)

    def lin(kw, kb, fan_in, fan_out):
        bound = 1.0 / jnp.sqrt(jnp.float32(fan_in))
        w = jax.random.uniform(kw, (fan_in, fan_out), jnp.float32, -bound, bound)
        b = jax.random.uniform(kb, (1, fan_out), jnp.float32, -bound, bound)
        return w, b

    w1, b1 = lin(ks[0], ks[1], state_dim, hidden_dim)
    wv, bv = lin(ks[2], ks[3], hidden_dim, 1)
    wa, ba = lin(ks[4], ks[5], hidden_dim, action_dim)
    return {"w1": w1, "b1": b1, "wv": wv, "bv": bv, "wa": wa, "ba": ba}


def pack_params(raw, out_pad=128):
    """Pack raw Linear params into the fused layout (done ONCE, outside kernel).

    - b1 is folded into W1 as an extra input row (pairs with the constant-1
      input column the wrapper appends to x).
    - The A and V heads are fused column-wise ([A | V]) and zero-padded on the
      lane axis to `out_pad` so the head matmul / output block are lane-dense.
    - The fused-head bias is a separate (1, out_pad) row added on the VPU.
    """
    w1, b1 = raw["w1"], raw["b1"]          # (S,H), (1,H)
    wv, bv = raw["wv"], raw["bv"]          # (H,1), (1,1)
    wa, ba = raw["wa"], raw["ba"]          # (H,A), (1,A)
    S, H = w1.shape
    A = wa.shape[1]

    w1_aug = jnp.concatenate([w1, b1], axis=0)                   # (S+1, H)

    w_av = jnp.concatenate([wa, wv], axis=1)                     # (H, A+1)
    b_av = jnp.concatenate([ba, bv], axis=1)                     # (1, A+1)
    n_out = max(out_pad, A + 1)
    wav_pad = jnp.zeros((H, n_out), w_av.dtype).at[:, :A + 1].set(w_av)
    bav_pad = jnp.zeros((1, n_out), b_av.dtype).at[:, :A + 1].set(b_av)

    # NOTE: if hidden_dim is ever scaled up (H >= ~512), pre-cast w1_aug /
    # wav_pad (and x in the wrapper) to bf16 here for full MXU rate on
    # v6e/v7x; keep preferred_element_type=f32 and the elementwise math in f32.
    return {"w1_aug": w1_aug, "wav_pad": wav_pad, "bav_pad": bav_pad,
            "action_dim": A}


def vanet_reference(x, raw):
    h = jnp.maximum(x @ raw["w1"] + raw["b1"], 0.0)
    V = h @ raw["wv"] + raw["bv"]
    A = h @ raw["wa"] + raw["ba"]
    return V + A - jnp.mean(A, axis=1, keepdims=True)


if __name__ == "__main__":
    # CartPole-v0 dims from the module: state_dim=4, action_dim=2, hidden=128.
    state_dim, hidden_dim, action_dim = 4, 128, 2
    batch = 8

    key = jax.random.PRNGKey(0)
    k_params, k_x = jax.random.split(key)

    raw = init_params(k_params, state_dim, hidden_dim, action_dim)
    params = pack_params(raw)
    x = jax.random.normal(k_x, (batch, state_dim), dtype=jnp.float32)

    q_ref = vanet_reference(x, raw)

    # Default lane-dense output path.
    q = jax.block_until_ready(vanet_forward(x, params))
    assert q.shape == (batch, action_dim)
    assert jnp.allclose(q, q_ref, atol=1e-5, rtol=1e-5)

    # Packed-output fallback path (used for huge batches on v5e).
    q2 = jax.block_until_ready(vanet_forward(x, params, lane_dense_out=False))
    assert q2.shape == (batch, action_dim)
    assert jnp.allclose(q2, q_ref, atol=1e-5, rtol=1e-5)

    print("KERNEL_OK")
</pallas_src>

<mosaic_0001>
module attributes {stable_mosaic.version = 11 : i64} {
  func.func @vanet_kernel(%arg0: i32, %arg1: memref<8x5xf32, #tpu.memory_space<vmem>>, %arg2: memref<5x128xf32, #tpu.memory_space<vmem>>, %arg3: memref<128x128xf32, #tpu.memory_space<vmem>>, %arg4: memref<1x128xf32, #tpu.memory_space<vmem>>, %arg5: memref<8x128xf32, #tpu.memory_space<vmem>>) attributes {dimension_semantics = [#tpu.dimension_semantics<parallel>], iteration_bounds = array<i64: 1>, scalar_prefetch = 0 : i64, scratch_operands = 0 : i64, tpu.core_type = #tpu.core_type<tc>, window_params = [{transform_indices = @transform_0, window_bounds = array<i64: 8, 5>}, {pipeline_mode = #tpu.pipeline_mode<synchronous>, transform_indices = @transform_1, window_bounds = array<i64: 5, 128>}, {pipeline_mode = #tpu.pipeline_mode<synchronous>, transform_indices = @transform_2, window_bounds = array<i64: 128, 128>}, {pipeline_mode = #tpu.pipeline_mode<synchronous>, transform_indices = @transform_3, window_bounds = array<i64: 1, 128>}, {transform_indices = @transform_4, window_bounds = array<i64: 8, 128>}]} {
    %c0 = arith.constant 0 : index
    %c0_0 = arith.constant 0 : index
    %0 = vector.load %arg1[%c0, %c0_0] : memref<8x5xf32, #tpu.memory_space<vmem>>, vector<8x5xf32>
    %c0_1 = arith.constant 0 : index
    %c0_2 = arith.constant 0 : index
    %1 = vector.load %arg2[%c0_1, %c0_2] : memref<5x128xf32, #tpu.memory_space<vmem>>, vector<5x128xf32>
    %cst = arith.constant dense<0.000000e+00> : vector<8x128xf32>
    %2 = tpu.matmul %0, %1, %cst {dimension_numbers = #tpu.dot_dimension_numbers<[1], [0], [0], [1], [0, 0, 1, 1], [], []>} : vector<8x5xf32>, vector<5x128xf32>, vector<8x128xf32> -> vector<8x128xf32>
    %cst_3 = arith.constant 0.000000e+00 : f32
    %3 = vector.broadcast %cst_3 : f32 to vector<8x128xf32>
    %4 = arith.maximumf %2, %3 : vector<8x128xf32>
    %c0_4 = arith.constant 0 : index
    %c0_5 = arith.constant 0 : index
    %5 = vector.load %arg3[%c0_4, %c0_5] : memref<128x128xf32, #tpu.memory_space<vmem>>, vector<128x128xf32>
    %cst_6 = arith.constant dense<0.000000e+00> : vector<8x128xf32>
    %6 = tpu.matmul %4, %5, %cst_6 {dimension_numbers = #tpu.dot_dimension_numbers<[1], [0], [0], [1], [0, 0, 1, 1], [], []>} : vector<8x128xf32>, vector<128x128xf32>, vector<8x128xf32> -> vector<8x128xf32>
    %c0_7 = arith.constant 0 : index
    %c0_8 = arith.constant 0 : index
    %7 = vector.load %arg4[%c0_7, %c0_8] : memref<1x128xf32, #tpu.memory_space<vmem>>, vector<1x128xf32>
    %8 = vector.broadcast %7 : vector<1x128xf32> to vector<8x128xf32>
    %9 = arith.addf %6, %8 : vector<8x128xf32>
    %10 = vector.extract_strided_slice %9 {offsets = [0, 0], sizes = [8, 2], strides = [1, 1]} : vector<8x128xf32> to vector<8x2xf32>
    %11 = vector.extract_strided_slice %9 {offsets = [0, 2], sizes = [8, 1], strides = [1, 1]} : vector<8x128xf32> to vector<8x1xf32>
    %cst_9 = arith.constant dense<0.000000e+00> : vector<8xf32>
    %12 = vector.multi_reduction <add>, %10, %cst_9 [1] : vector<8x2xf32> to vector<8xf32>
    %13 = vector.shape_cast %12 : vector<8xf32> to vector<8x1xf32>
    %cst_10 = arith.constant 2.000000e+00 : f32
    %14 = vector.broadcast %cst_10 : f32 to vector<8x1xf32>
    %15 = arith.divf %13, %14 : vector<8x1xf32>
    %16 = arith.subf %11, %15 : vector<8x1xf32>
    %17 = vector.broadcast %16 : vector<8x1xf32> to vector<8x128xf32>
    %18 = arith.addf %9, %17 : vector<8x128xf32>
    %c0_11 = arith.constant 0 : index
    %c0_12 = arith.constant 0 : index
    %19 = vector.load %arg5[%c0_11, %c0_12] : memref<8x128xf32, #tpu.memory_space<vmem>>, vector<8x128xf32>
    tpu.vector_store %arg5[%c0_11, %c0_12], %18 {strides = array<i32>} : memref<8x128xf32, #tpu.memory_space<vmem>>, vector<8x128xf32>,
    return
  }
  func.func @transform_0(%arg0: i32) -> (i32, i32) {
    %c0_i32 = arith.constant 0 : i32
    %c0_i32_0 = arith.constant 0 : i32
    return %arg0, %c0_i32 : i32, i32
  }
  func.func @transform_1(%arg0: i32) -> (i32, i32) {
    %c0_i32 = arith.constant 0 : i32
    %c0_i32_0 = arith.constant 0 : i32
    %c0_i32_1 = arith.constant 0 : i32
    return %c0_i32, %c0_i32_0 : i32, i32
  }
  func.func @transform_2(%arg0: i32) -> (i32, i32) {
    %c0_i32 = arith.constant 0 : i32
    %c0_i32_0 = arith.constant 0 : i32
    %c0_i32_1 = arith.constant 0 : i32
    return %c0_i32, %c0_i32_0 : i32, i32
  }
  func.func @transform_3(%arg0: i32) -> (i32, i32) {
    %c0_i32 = arith.constant 0 : i32
    %c0_i32_0 = arith.constant 0 : i32
    %c0_i32_1 = arith.constant 0 : i32
    return %c0_i32, %c0_i32_0 : i32, i32
  }
  func.func @transform_4(%arg0: i32) -> (i32, i32) {
    %c0_i32 = arith.constant 0 : i32
    %c0_i32_0 = arith.constant 0 : i32
    return %arg0, %c0_i32 : i32, i32
  }
}

</mosaic_0001>

<llo_original>
// kernel: tpu_custom_call.1
$region0: #{tpu_custom_call.1}
  #allocation0 [shape = 'u32[]', space=smem, size = 0x4, offset = 0x4, fixed_abs, tag = 'smem constant byte address 0x4 - core index']
  #allocation1 [shape = 'u32[144,128]{1,0:T(1,128)}', space=vmem, size = 0x12000, scoped, tag = 'internal scratch']
  %s0 = inlined_call_operand.hbm [shape: f32[8,5], index: 0, kind: input, shape index: {}]
  %s1 = inlined_call_operand.hbm [shape: f32[5,128], index: 1, kind: input, shape index: {}]
  %s2 = inlined_call_operand.hbm [shape: f32[128,128], index: 2, kind: input, shape index: {}]
  %s3 = inlined_call_operand.vmem [shape: f32[1,128], index: 3, kind: input, shape index: {}]
  %s4 = inlined_call_operand.hbm [shape: f32[8,128], index: 4, kind: output, shape index: {}]
  %s5 = sld [smem:[#allocation0]]
  $region38: #{tpu_custom_call.1} parent=0
    _
  %s7 = ssub.s32 1, %s5
  %s8 = scalar_select 0, %s7, %s5
  $region1: #{tpu_custom_call.1} parent=0
    #allocation2 [shape = 'u8[4096]{0}', space=vmem, size = 0x1000, scoped, tag = 'input window, operand 0, single buffered']
    #allocation3 [shape = 's32[1]{0}', space=sflag, size = 0x4, scoped, tag = 'scoped memory for tpu_custom_call.1']
    #allocation4 [shape = 's32[1]{0}', space=sflag, size = 0x4, scoped, tag = 'scoped memory for tpu_custom_call.1']
    #allocation5 [shape = 'u8[4096]{0}', space=vmem, size = 0x1000, scoped, tag = 'input window, operand 1, single buffered']
    #allocation6 [shape = 's32[1]{0}', space=sflag, size = 0x4, scoped, tag = 'scoped memory for tpu_custom_call.1']
    #allocation7 [shape = 'u8[65536]{0}', space=vmem, size = 0x10000, scoped, tag = 'input window, operand 2, single buffered']
    #allocation8 [shape = 'u8[4096]{0}', space=vmem, size = 0x1000, scoped, tag = 'output window, operand 0, single buffered']
    %9 = vsyncpa [#allocation3], 0
    %10 = vsyncpa [#allocation6], 0
    %11 = vsyncpa [#allocation4], 0
    // Predicated region
    $region2: #{tpu_custom_call.1} parent=1 // pred_check
      _
    $region3: #{tpu_custom_call.1} parent=1 // pred_check_branch
      %13 = sbr.rel (0) target = $region5
    $region4: #{tpu_custom_call.1} parent=1 // pred_region
      %s15 = ssub.s32 128, 128
      %16 = vsyncadd [#allocation3], %s15
      %s18 = sshll.u32 [#allocation2], 4
      %s19 = int_to_ptr.vmem [resolvable:$true] %s18
      %21 = dma.hbm_to_vmem [thread:$0]  %s0, 128, %s19, [#allocation3]
    $region5: #{tpu_custom_call.1} parent=1 // pred_fallthru
      _
    // Predicated region
    $region6: #{tpu_custom_call.1} parent=1 // pred_check
      _
    $region7: #{tpu_custom_call.1} parent=1 // pred_check_branch
      %23 = sbr.rel (0) target = $region9
    $region8: #{tpu_custom_call.1} parent=1 // pred_region
      %s25 = ssub.s32 128, 128
      %26 = vsyncadd [#allocation6], %s25
      %s28 = sshll.u32 [#allocation5], 4
      %s29 = int_to_ptr.vmem [resolvable:$true] %s28
      %31 = dma.hbm_to_vmem [thread:$0]  %s1, 128, %s29, [#allocation6]
    $region9: #{tpu_custom_call.1} parent=1 // pred_fallthru
      _
    // Predicated region
    $region10: #{tpu_custom_call.1} parent=1 // pred_check
      _
    $region11: #{tpu_custom_call.1} parent=1 // pred_check_branch
      %33 = sbr.rel (0) target = $region13
    $region12: #{tpu_custom_call.1} parent=1 // pred_region
      %s35 = ssub.s32 2048, 2048
      %36 = vsyncadd [#allocation6], %s35
      %s37 = sshll.u32 [#allocation7], 4
      %s38 = int_to_ptr.vmem [resolvable:$true] %s37
      %43 = dma.hbm_to_vmem [thread:$0]  %s2, 2048, %s38, [#allocation6], 128, 128, 8
    $region13: #{tpu_custom_call.1} parent=1 // pred_fallthru
      _
    // Predicated region
    $region14: #{tpu_custom_call.1} parent=1 // pred_check
      _
    $region15: #{tpu_custom_call.1} parent=1 // pred_check_branch
      %45 = sbr.rel (0) target = $region17
    $region16: #{tpu_custom_call.1} parent=1 // pred_region
      _
    $region17: #{tpu_custom_call.1} parent=1 // pred_fallthru
      _
    // Predicated region
    $region18: #{tpu_custom_call.1} parent=1 // pred_check
      _
    $region19: #{tpu_custom_call.1} parent=1 // pred_check_branch
      %47 = sbr.rel (0) target = $region21
    $region20: #{tpu_custom_call.1} parent=1 // pred_region
      %48 = dma.done [#allocation3], 128
    $region21: #{tpu_custom_call.1} parent=1 // pred_fallthru
      _
    // Predicated region
    $region22: #{tpu_custom_call.1} parent=1 // pred_check
      _
    $region23: #{tpu_custom_call.1} parent=1 // pred_check_branch
      %50 = sbr.rel (0) target = $region25
    $region24: #{tpu_custom_call.1} parent=1 // pred_region
      %51 = dma.done [#allocation6], 128
    $region25: #{tpu_custom_call.1} parent=1 // pred_fallthru
      _
    // Predicated region
    $region26: #{tpu_custom_call.1} parent=1 // pred_check
      _
    $region27: #{tpu_custom_call.1} parent=1 // pred_check_branch
      %53 = sbr.rel (0) target = $region29
    $region28: #{tpu_custom_call.1} parent=1 // pred_region
      %54 = dma.done [#allocation6], 2048
    $region29: #{tpu_custom_call.1} parent=1 // pred_fallthru
      _
    %v55 = vld [vmem:[#allocation2] sm:$0xff]
    %v56 = vld [vmem:[#allocation5] sm:$0x1f]
    %vm57 = vcmask 39936
    %v59 = vsel %vm57, %v55, 0
    %vm61 = vcmask 1044480
    %v63 = vsel %vm61, %v56, 0
    %65 = vmatprep.subr.mxu0 0.0
    %66 = vmatpush1.msra.mxu0 %v63
    %67 = vmatprep.subr.mxu0 0.0
    %68 = vmatpush1.msra.mxu0 0.0
    %69 = vmatprep.subr.mxu0 0.0
    %70 = vmatpush1.msra.mxu0 0.0
    %71 = vmatprep.subr.mxu0 0.0
    %72 = vmatpush1.msra.mxu0 0.0
    %73 = vmatprep.subr.mxu0 0.0
    %74 = vmatpush1.msra.mxu0 0.0
    %75 = vmatprep.subr.mxu0 0.0
    %76 = vmatpush1.msra.mxu0 0.0
    %77 = vmatprep.subr.mxu0 0.0
    %78 = vmatpush1.msra.mxu0 0.0
    %79 = vmatprep.subr.mxu0 0.0
    %80 = vmatpush1.msra.mxu0 0.0
    %81 = vmatprep.subr.mxu0 0.0
    %82 = vmatpush1.msra.mxu0 0.0
    %83 = vmatprep.subr.mxu0 0.0
    %84 = vmatpush1.msra.mxu0 0.0
    %85 = vmatprep.subr.mxu0 0.0
    %86 = vmatpush1.msra.mxu0 0.0
    %87 = vmatprep.subr.mxu0 0.0
    %88 = vmatpush1.msra.mxu0 0.0
    %89 = vmatprep.subr.mxu0 0.0
    %90 = vmatpush1.msra.mxu0 0.0
    %91 = vmatprep.subr.mxu0 0.0
    %92 = vmatpush1.msra.mxu0 0.0
    %93 = vmatprep.subr.mxu0 0.0
    %94 = vmatpush1.msra.mxu0 0.0
    %95 = vmatprep.subr.mxu0 0.0
    %96 = vmatpush1.msra.mxu0 0.0
    %97 = vmatprep.subr.mxu0 0.0
    %98 = vmatpush1.msra.mxu0 0.0
    %99 = vmatprep.subr.mxu0 0.0
    %100 = vmatpush1.msra.mxu0 0.0
    %101 = vmatprep.subr.mxu0 0.0
    %102 = vmatpush1.msra.mxu0 0.0
    %103 = vmatprep.subr.mxu0 0.0
    %104 = vmatpush1.msra.mxu0 0.0
    %105 = vmatprep.subr.mxu0 0.0
    %106 = vmatpush1.msra.mxu0 0.0
    %107 = vmatprep.subr.mxu0 0.0
    %108 = vmatpush1.msra.mxu0 0.0
    %109 = vmatprep.subr.mxu0 0.0
    %110 = vmatpush1.msra.mxu0 0.0
    %111 = vmatprep.subr.mxu0 0.0
    %112 = vmatpush1.msra.mxu0 0.0
    %113 = vmatprep.subr.mxu0 0.0
    %114 = vmatpush1.msra.mxu0 0.0
    %115 = vmatprep.subr.mxu0 0.0
    %116 = vmatpush1.msra.mxu0 0.0
    %117 = vmatprep.subr.mxu0 0.0
    %118 = vmatpush1.msra.mxu0 0.0
    %119 = vmatprep.subr.mxu0 0.0
    %120 = vmatpush1.msra.mxu0 0.0
    %121 = vmatprep.subr.mxu0 0.0
    %122 = vmatpush1.msra.mxu0 0.0
    %123 = vmatprep.subr.mxu0 0.0
    %124 = vmatpush1.msra.mxu0 0.0
    %125 = vmatprep.subr.mxu0 0.0
    %126 = vmatpush1.msra.mxu0 0.0
    %127 = vmatprep.subr.mxu0 0.0
    %128 = vmatpush1.msra.mxu0 0.0
    %129 = vmatprep.mubr.f32.mxu0 0.0
    %130 = vmatmul.mubr.f32.gmra.mrb[0].mxu0 %v59
    %v131 = vpop.f32.mrb[0].mxu0
    %v132 = vadd.f32 0.0, %v131
    %v133 = vpop.f32.mrb[0].mxu0
    %134 = vdwg.mxu0
    %v135 = vmax.f32 %v132, 0.0
    %v136 = vld [vmem:[#allocation7] sm:$0xff]
    %v137 = vld [vmem:[#allocation7 + $0x8] sm:$0xff]
    %v138 = vld [vmem:[#allocation7 + $0x10] sm:$0xff]
    %v139 = vld [vmem:[#allocation7 + $0x18] sm:$0xff]
    %v140 = vld [vmem:[#allocation7 + $0x20] sm:$0xff]
    %v141 = vld [vmem:[#allocation7 + $0x28] sm:$0xff]
    %v142 = vld [vmem:[#allocation7 + $0x30] sm:$0xff]
    %v143 = vld [vmem:[#allocation7 + $0x38] sm:$0xff]
    %v144 = vld [vmem:[#allocation7 + $0x40] sm:$0xff]
    %v145 = vld [vmem:[#allocation7 + $0x48] sm:$0xff]
    %v146 = vld [vmem:[#allocation7 + $0x50] sm:$0xff]
    %v147 = vld [vmem:[#allocation7 + $0x58] sm:$0xff]
    %v148 = vld [vmem:[#allocation7 + $0x60] sm:$0xff]
    %v149 = vld [vmem:[#allocation7 + $0x68] sm:$0xff]
    %v150 = vld [vmem:[#allocation7 + $0x70] sm:$0xff]
    %v151 = vld [vmem:[#allocation7 + $0x78] sm:$0xff]
    %v152 = vld [vmem:[%s3] sm:$0x1]
    %v154 = vlaneseq
    %v155 = vshrl.u32 %v154, 7
    %v156 = vsub.s32 0, %v155
    %v157 = vrot.slane %v152, %v156
    %159 = vmatprep.subr.mxu0 0.0
    %160 = vmatpush1.msra.mxu0 %v136
    %161 = vmatprep.subr.mxu0 0.0
    %162 = vmatpush1.msra.mxu0 %v137
    %163 = vmatprep.subr.mxu0 0.0
    %164 = vmatpush1.msra.mxu0 %v138
    %165 = vmatprep.subr.mxu0 0.0
    %166 = vmatpush1.msra.mxu0 %v139
    %167 = vmatprep.subr.mxu0 0.0
    %168 = vmatpush1.msra.mxu0 %v140
    %169 = vmatprep.subr.mxu0 0.0
    %170 = vmatpush1.msra.mxu0 %v141
    %171 = vmatprep.subr.mxu0 0.0
    %172 = vmatpush1.msra.mxu0 %v142
    %173 = vmatprep.subr.mxu0 0.0
    %174 = vmatpush1.msra.mxu0 %v143
    %175 = vmatprep.subr.mxu0 0.0
    %176 = vmatpush1.msra.mxu0 %v144
    %177 = vmatprep.subr.mxu0 0.0
    %178 = vmatpush1.msra.mxu0 %v145
    %179 = vmatprep.subr.mxu0 0.0
    %180 = vmatpush1.msra.mxu0 %v146
    %181 = vmatprep.subr.mxu0 0.0
    %182 = vmatpush1.msra.mxu0 %v147
    %183 = vmatprep.subr.mxu0 0.0
    %184 = vmatpush1.msra.mxu0 %v148
    %185 = vmatprep.subr.mxu0 0.0
    %186 = vmatpush1.msra.mxu0 %v149
    %187 = vmatprep.subr.mxu0 0.0
    %188 = vmatpush1.msra.mxu0 %v150
    %189 = vmatprep.subr.mxu0 0.0
    %190 = vmatpush1.msra.mxu0 %v151
    %191 = vmatprep.subr.mxu0 0.0
    %192 = vmatpush1.msra.mxu0 0.0
    %193 = vmatprep.subr.mxu0 0.0
    %194 = vmatpush1.msra.mxu0 0.0
    %195 = vmatprep.subr.mxu0 0.0
    %196 = vmatpush1.msra.mxu0 0.0
    %197 = vmatprep.subr.mxu0 0.0
    %198 = vmatpush1.msra.mxu0 0.0
    %199 = vmatprep.subr.mxu0 0.0
    %200 = vmatpush1.msra.mxu0 0.0
    %201 = vmatprep.subr.mxu0 0.0
    %202 = vmatpush1.msra.mxu0 0.0
    %203 = vmatprep.subr.mxu0 0.0
    %204 = vmatpush1.msra.mxu0 0.0
    %205 = vmatprep.subr.mxu0 0.0
    %206 = vmatpush1.msra.mxu0 0.0
    %207 = vmatprep.subr.mxu0 0.0
    %208 = vmatpush1.msra.mxu0 0.0
    %209 = vmatprep.subr.mxu0 0.0
    %210 = vmatpush1.msra.mxu0 0.0
    %211 = vmatprep.subr.mxu0 0.0
    %212 = vmatpush1.msra.mxu0 0.0
    %213 = vmatprep.subr.mxu0 0.0
    %214 = vmatpush1.msra.mxu0 0.0
    %215 = vmatprep.subr.mxu0 0.0
    %216 = vmatpush1.msra.mxu0 0.0
    %217 = vmatprep.subr.mxu0 0.0
    %218 = vmatpush1.msra.mxu0 0.0
    %219 = vmatprep.subr.mxu0 0.0
    %220 = vmatpush1.msra.mxu0 0.0
    %221 = vmatprep.subr.mxu0 0.0
    %222 = vmatpush1.msra.mxu0 0.0
    %223 = vmatprep.mubr.f32.mxu0 0.0
    %224 = vmatmul.mubr.f32.gmra.mrb[0].mxu0 %v135
    %v225 = vpop.f32.mrb[0].mxu0
    %v226 = vadd.f32 %v157, %v225
    %v227 = vpop.f32.mrb[0].mxu0
    %228 = vdwg.mxu0
    %vm229 = vcmask 15360
    %v230 = vsel %vm229, %v226, 0.0
    %231 = vadd.xlane.f32.xlu0 %v230
    %v232 = vpop.xlane.xlu0 %231
    %v233 = vrcp.pop 2.0
    %v234 = vmul.f32 %v232, %v233
    %v235 = vsub.f32 %v226, %v234
    %237 = vset.pattern.permute.xlu0 2
    %238 = vperm.xlu0 %237, %v235
    %v239 = vpop.permute.xlu0 %238
    %v241 = vadd.f32 %v226, %v239
    %242 = vst [vmem:[#allocation8] sm:$0xff] %v241
    // Predicated region
    $region30: #{tpu_custom_call.1} parent=1 // pred_check
      _
    $region31: #{tpu_custom_call.1} parent=1 // pred_check_branch
      %244 = sbr.rel (0) target = $region33
    $region32: #{tpu_custom_call.1} parent=1 // pred_region
      %s246 = ssub.s32 128, 128
      %247 = vsyncadd [#allocation4], %s246
      %s249 = sshll.u32 [#allocation8], 4
      %s250 = int_to_ptr.vmem [resolvable:$true] %s249
      %252 = dma.vmem_to_hbm [thread:$0]  %s250, 128, %s4, [#allocation4]
    $region33: #{tpu_custom_call.1} parent=1 // pred_fallthru
      _
    // Predicated region
    $region34: #{tpu_custom_call.1} parent=1 // pred_check
      _
    $region35: #{tpu_custom_call.1} parent=1 // pred_check_branch
      %254 = sbr.rel (0) target = $region37
    $region36: #{tpu_custom_call.1} parent=1 // pred_region
      %255 = dma.done [#allocation4], 128
    $region37: #{tpu_custom_call.1} parent=1 // pred_fallthru
      _
    %256 = vsyncpa [#allocation3], 1
    %257 = vsyncpa [#allocation6], 1
    %258 = vsyncpa [#allocation4], 1

</llo_original>
